<compile_context>
chip_gen: v5e
topology: v5e:2x2
jax: 0.10.0
libtpu: 0.0.40
codegen_flags: <defaults>
</compile_context>

<pallas_src>
import jax
import jax.numpy as jnp
from jax.experimental import pallas as pl
from jax.experimental.pallas import tpu as pltpu


def _seg_head_kernel_cout1(x_ref, w_ref, b_ref, o_ref):
    # x_ref: (Cin, thw) VMEM; w_ref: (Cin, 1) VMEM; b_ref: (1,) SMEM scalar;
    # o_ref: (1, thw) VMEM (lane-dense).
    prod = x_ref[...].astype(jnp.float32) * w_ref[...].astype(jnp.float32)  # VPU
    acc = jnp.sum(prod, axis=0, keepdims=True)                              # XLU sublane reduce
    o_ref[...] = (acc + b_ref[0]).astype(o_ref.dtype)


def _seg_head_kernel_matmul(x_ref, w_ref, b_ref, o_ref):
    # x_ref: (Cin, thw); w_ref: (Cout, Cin); b_ref: (Cout, 1); o_ref: (Cout, thw)
    acc = jnp.dot(w_ref[...], x_ref[...], preferred_element_type=jnp.float32)  # MXU
    o_ref[...] = (acc + b_ref[...].astype(jnp.float32)).astype(o_ref.dtype)


def base_seg_head_forward(features_nchw, weight, bias, *, max_thw=2048):
    """1x1-conv segmentation head, eval mode.

    features_nchw: (N, Cin, H, W); weight: (Cout, Cin); bias: (Cout,).
    Returns (logits_nchw, {}) mirroring BaseSegHead.forward in eval mode.
    """
    N, Cin, H, W = features_nchw.shape
    Cout = weight.shape[0]
    HW = H * W

    # Free reshape: stay in NCHW, no transposes, no extra HBM passes.
    x = features_nchw.reshape(N, Cin, HW)

    # Spatial tiling: full extent when small (always layout-legal), otherwise
    # big lane-dense tiles (multiple of 128); pad ragged tails and slice after.
    if HW <= max_thw:
        thw = HW
        HWp = HW
    else:
        thw = max_thw                                   # multiple of 128
        HWp = ((HW + thw - 1) // thw) * thw
        if HWp != HW:
            x = jnp.pad(x, ((0, 0), (0, 0), (0, HWp - HW)))
    n_hw = HWp // thw

    x_spec = pl.BlockSpec((None, Cin, thw), lambda n, j: (n, 0, j))
    out_spec = pl.BlockSpec((None, Cout, thw), lambda n, j: (n, 0, j))

    if Cout == 1:
        kernel = _seg_head_kernel_cout1
        w_arg = jnp.transpose(weight)                   # (Cin, 1) — tiny, free
        b_arg = bias.reshape(Cout)                      # (1,) -> SMEM scalar
        in_specs = [
            x_spec,
            pl.BlockSpec((Cin, 1), lambda n, j: (0, 0)),
            pl.BlockSpec(memory_space=pltpu.MemorySpace.SMEM),
        ]
    else:
        kernel = _seg_head_kernel_matmul
        w_arg = weight                                  # (Cout, Cin)
        b_arg = bias.reshape(Cout, 1)                   # (Cout, 1) bias column
        in_specs = [
            x_spec,
            pl.BlockSpec((Cout, Cin), lambda n, j: (0, 0)),
            pl.BlockSpec((Cout, 1), lambda n, j: (0, 0)),
        ]

    out_flat = pl.pallas_call(
        kernel,
        out_shape=jax.ShapeDtypeStruct((N, Cout, HWp), features_nchw.dtype),
        grid=(N, n_hw),
        in_specs=in_specs,
        out_specs=out_spec,
        compiler_params=pltpu.CompilerParams(
            # Both axes independent -> shard across both TCs on v7x megacore.
            dimension_semantics=("parallel", "parallel"),
        ),
    )(x, w_arg, b_arg)

    if HWp != HW:
        out_flat = out_flat[:, :, :HW]
    logits = out_flat.reshape(N, Cout, H, W)
    # TODO(synk): training path (dropout p=0.5 + abstract self.losses) not
    # implemented; eval-mode forward returns the empty loss dict.
    return logits, {}


if __name__ == "__main__":
    # Module defaults: in_channel=64, out_channel=1.
    N, Cin, H, W = 2, 64, 16, 16

    key = jax.random.PRNGKey(0)
    kx, kw, kb, kw2, kb2 = jax.random.split(key, 5)

    features = jax.random.normal(kx, (N, Cin, H, W), dtype=jnp.float32)

    # --- default head: Cout = 1 (VPU + sublane-reduce path, SMEM bias) ---
    Cout = 1
    weight = jax.random.normal(kw, (Cout, Cin), dtype=jnp.float32) * 0.05
    bias = jax.random.normal(kb, (Cout,), dtype=jnp.float32) * 0.05

    logits, losses = base_seg_head_forward(features, weight, bias)
    logits = jax.block_until_ready(logits)

    ref = jnp.einsum("nchw,oc->nohw", features, weight) + bias.reshape(1, Cout, 1, 1)
    assert logits.shape == (N, Cout, H, W)
    assert jnp.allclose(logits, ref, atol=1e-4, rtol=1e-4)
    assert losses == {}

    # --- wider head: Cout = 8 (MXU matmul path, VMEM bias column) ---
    Cout2 = 8
    weight2 = jax.random.normal(kw2, (Cout2, Cin), dtype=jnp.float32) * 0.05
    bias2 = jax.random.normal(kb2, (Cout2,), dtype=jnp.float32) * 0.05

    logits2, losses2 = base_seg_head_forward(features, weight2, bias2)
    logits2 = jax.block_until_ready(logits2)

    ref2 = jnp.einsum("nchw,oc->nohw", features, weight2) + bias2.reshape(1, Cout2, 1, 1)
    assert logits2.shape == (N, Cout2, H, W)
    assert jnp.allclose(logits2, ref2, atol=1e-4, rtol=1e-4)
    assert losses2 == {}

    print("KERNEL_OK")
</pallas_src>

<mosaic_0001>
module attributes {stable_mosaic.version = 11 : i64} {
  func.func @_seg_head_kernel_cout1(%arg0: i32, %arg1: i32, %arg2: memref<1x64x256xf32, #tpu.memory_space<vmem>>, %arg3: memref<64x1xf32, #tpu.memory_space<vmem>>, %arg4: memref<1xf32, #tpu.memory_space<smem>>, %arg5: memref<1x1x256xf32, #tpu.memory_space<vmem>>) attributes {dimension_semantics = [#tpu.dimension_semantics<parallel>, #tpu.dimension_semantics<parallel>], iteration_bounds = array<i64: 2, 1>, scalar_prefetch = 0 : i64, scratch_operands = 0 : i64, tpu.core_type = #tpu.core_type<tc>, window_params = [{transform_indices = @transform_0, window_bounds = array<i64: 1, 64, 256>}, {pipeline_mode = #tpu.pipeline_mode<synchronous>, transform_indices = @transform_1, window_bounds = array<i64: 64, 1>}, {transform_indices = @transform_2, window_bounds = array<i64: 1>}, {transform_indices = @transform_3, window_bounds = array<i64: 1, 1, 256>}]} {
    %c0 = arith.constant 0 : index
    %c0_0 = arith.constant 0 : index
    %c0_1 = arith.constant 0 : index
    %0 = vector.load %arg2[%c0, %c0_0, %c0_1] : memref<1x64x256xf32, #tpu.memory_space<vmem>>, vector<1x64x256xf32>
    %1 = vector.shape_cast %0 : vector<1x64x256xf32> to vector<64x256xf32>
    %c0_2 = arith.constant 0 : index
    %c0_3 = arith.constant 0 : index
    %2 = vector.load %arg3[%c0_2, %c0_3] : memref<64x1xf32, #tpu.memory_space<vmem>>, vector<64x1xf32>
    %3 = vector.broadcast %2 : vector<64x1xf32> to vector<64x256xf32>
    %4 = arith.mulf %1, %3 : vector<64x256xf32>
    %cst = arith.constant dense<0.000000e+00> : vector<256xf32>
    %5 = vector.multi_reduction <add>, %4, %cst [0] : vector<64x256xf32> to vector<256xf32>
    %6 = vector.shape_cast %5 : vector<256xf32> to vector<1x256xf32>
    %c0_4 = arith.constant 0 : index
    %7 = memref.load %arg4[%c0_4] : memref<1xf32, #tpu.memory_space<smem>>
    %8 = vector.broadcast %7 : f32 to vector<1x256xf32>
    %9 = arith.addf %6, %8 : vector<1x256xf32>
    %c0_5 = arith.constant 0 : index
    %c0_6 = arith.constant 0 : index
    %c0_7 = arith.constant 0 : index
    %10 = vector.load %arg5[%c0_5, %c0_6, %c0_7] : memref<1x1x256xf32, #tpu.memory_space<vmem>>, vector<1x1x256xf32>
    %11 = vector.shape_cast %10 : vector<1x1x256xf32> to vector<1x256xf32>
    %12 = vector.shape_cast %9 : vector<1x256xf32> to vector<1x1x256xf32>
    tpu.vector_store %arg5[%c0_5, %c0_6, %c0_7], %12 {strides = array<i32>} : memref<1x1x256xf32, #tpu.memory_space<vmem>>, vector<1x1x256xf32>,
    return
  }
  func.func @transform_0(%arg0: i32, %arg1: i32) -> (i32, i32, i32) {
    %c0_i32 = arith.constant 0 : i32
    %c0_i32_0 = arith.constant 0 : i32
    return %arg0, %c0_i32, %arg1 : i32, i32, i32
  }
  func.func @transform_1(%arg0: i32, %arg1: i32) -> (i32, i32) {
    %c0_i32 = arith.constant 0 : i32
    %c0_i32_0 = arith.constant 0 : i32
    %c0_i32_1 = arith.constant 0 : i32
    return %c0_i32, %c0_i32_0 : i32, i32
  }
  func.func @transform_2(%arg0: i32, %arg1: i32) -> i32 {
    %c0_i32 = arith.constant 0 : i32
    %c0_i32_0 = arith.constant 0 : i32
    return %c0_i32 : i32
  }
  func.func @transform_3(%arg0: i32, %arg1: i32) -> (i32, i32, i32) {
    %c0_i32 = arith.constant 0 : i32
    %c0_i32_0 = arith.constant 0 : i32
    return %arg0, %c0_i32, %arg1 : i32, i32, i32
  }
}

</mosaic_0001>

<llo_original>
// kernel: tpu_custom_call.1
$region0: #{tpu_custom_call.1}
  #allocation0 [shape = 'u32[]', space=smem, size = 0x4, offset = 0x4, fixed_abs, tag = 'smem constant byte address 0x4 - core index']
  #allocation1 [shape = 'u32[72,128]{1,0:T(1,128)}', space=vmem, size = 0x9000, scoped, tag = 'internal scratch']
  #allocation2 [shape = 'f32[1]{0:T(128)S(6)}', space=smem, size = 0x200, scoped, tag = 'scoped memory for tpu_custom_call.1']
  %s0 = inlined_call_operand.hbm [shape: f32[2,64,256], index: 0, kind: input, shape index: {}]
  %s1 = inlined_call_operand.vmem [shape: f32[64,1], index: 1, kind: input, shape index: {}]
  %s2 = inlined_call_operand.<no memory space> [shape: f32[1], index: 2, kind: input, shape index: {}]
  %s3 = inlined_call_operand.hbm [shape: f32[2,1,256], index: 3, kind: output, shape index: {}]
  %s4 = sld [smem:[#allocation0]]
  $region49: #{tpu_custom_call.1} parent=0
    _
  %s6 = ssub.s32 1, %s4
  %s7 = scalar_select 0, %s6, %s4
  %8 = sst [smem:[#allocation2]] %s2
  $region1: #{tpu_custom_call.1} parent=0
    #allocation3 [shape = 'u8[131072]{0}', space=vmem, size = 0x20000, scoped, tag = 'input window, operand 0']
    #allocation4 [shape = 's32[2]{0}', space=sflag, size = 0x8, scoped, tag = 'scoped memory for tpu_custom_call.1']
    #allocation5 [shape = 's32[2]{0}', space=sflag, size = 0x8, scoped, tag = 'scoped memory for tpu_custom_call.1']
    #allocation6 [shape = 'u8[2048]{0}', space=vmem, size = 0x800, scoped, tag = 'output window, operand 0']
    %9 = vsyncpa [#allocation4], 0
    %s10 = scalar_lea.sflag [#allocation4], 1
    %11 = vsyncpa %s10, 0
    %12 = vsyncpa [#allocation5], 0
    %s13 = scalar_lea.sflag [#allocation5], 1
    %14 = vsyncpa %s13, 0
    loop: start=0, step=1, limit=4
    $region2: #{tpu_custom_call.1} parent=1 // loop_pre_header
      _
    $region3: #{tpu_custom_call.1} parent=1 // loop_header
      %s16 = sphi 0, %s20
      %p17 = scmp.ge.s32.totalorder %s16, 4
      %s23 = sphi 0, %s35
      %s24 = sphi 0, %s31
      %s25 = sphi 0, %s23
      %s26 = sphi 0, %s24
      %s27 = sphi 0, %s25
      %s28 = sphi 0, %s26
      %s40 = sphi 0, %s42
      %s43 = sphi 0, %s40
      %s44 = sphi 0, %s43
      %s60 = sphi 0, %s44
      %s64 = sphi 0, %s64
      %s66 = sphi 0, %s64
      %s67 = sphi 0, %s66
      %s81 = sphi 0, %s67
      %s85 = sphi 0, %s85
      %s87 = sphi 0, %s85
      %s88 = sphi 0, %s87
      %s102 = sphi 0, %s88
      %s110 = sphi 0, %s112
      %s113 = sphi 0, %s110
      %s114 = sphi 0, %s113
      %s130 = sphi 0, %s114
    $region4: #{tpu_custom_call.1} parent=1 // loop_header_branch
      %19 = sbr.rel (%p17) target = $region8
    $region5: #{tpu_custom_call.1} parent=1 // loop_body
      %s21 = ssub.s32 %s16, 1
      %s22 = ssub.s32 %s16, 2
      %s29 = sadd.s32 1, %s24
      %p30 = scmp.ge.s32.totalorder %s29, 1
      %s31 = scalar_select %p30, 0, %s29
      %s32 = sadd.s32 1, %s23
      %s33 = scalar_select %p30, %s32, %s23
      %p34 = scmp.ge.s32.totalorder %s33, 2
      %s35 = scalar_select %p34, 0, %s33
      %s36 = ssub.s32 %s23, %s35
      %s37 = ssub.s32 %s24, %s31
      %s38 = sor.u32 %s36, %s37
      %p39 = scmp.eq.s32.totalorder %s38, 0
      %s41 = sadd.s32 %s40, 1
      %s42 = scalar_select %p39, %s40, %s41
      %p45 = pneg %p39
      %p46 = scmp.eq.s32.totalorder %s16, 1
      %p47 = por %p45, %p46
      %p48 = scmp.ne.s32.totalorder %s40, %s43
      %p49 = scmp.eq.s32.totalorder %s16, 0
      %p50 = por %p48, %p49
      %p51 = scmp.ne.s32.totalorder %s40, %s43
      %p52 = scmp.eq.s32.totalorder %s21, 1
      %p53 = por %p51, %p52
      %p54 = scmp.ne.s32.totalorder %s43, %s44
      %p55 = scmp.eq.s32.totalorder %s21, 0
      %p56 = por %p54, %p55
      %p57 = scmp.ne.s32.totalorder %s43, %s44
      %p58 = scmp.eq.s32.totalorder %s22, 1
      %p59 = por %p57, %p58
      %p61 = scmp.ne.s32.totalorder %s44, %s60
      %p62 = scmp.eq.s32.totalorder %s22, 0
      %p63 = por %p61, %p62
      %s65 = sadd.s32 %s64, 1
      %p68 = scmp.eq.s32.totalorder %s16, 1
      %p69 = scmp.ne.s32.totalorder %s64, %s66
      %p70 = scmp.eq.s32.totalorder %s16, 0
      %p71 = por %p69, %p70
      %p72 = scmp.ne.s32.totalorder %s64, %s66
      %p73 = scmp.eq.s32.totalorder %s21, 1
      %p74 = por %p72, %p73
      %p75 = scmp.ne.s32.totalorder %s66, %s67
      %p76 = scmp.eq.s32.totalorder %s21, 0
      %p77 = por %p75, %p76
      %p78 = scmp.ne.s32.totalorder %s66, %s67
      %p79 = scmp.eq.s32.totalorder %s22, 1
      %p80 = por %p78, %p79
      %p82 = scmp.ne.s32.totalorder %s67, %s81
      %p83 = scmp.eq.s32.totalorder %s22, 0
      %p84 = por %p82, %p83
      %s86 = sadd.s32 %s85, 1
      %p89 = scmp.eq.s32.totalorder %s16, 1
      %p90 = scmp.ne.s32.totalorder %s85, %s87
      %p91 = scmp.eq.s32.totalorder %s16, 0
      %p92 = por %p90, %p91
      %p93 = scmp.ne.s32.totalorder %s85, %s87
      %p94 = scmp.eq.s32.totalorder %s21, 1
      %p95 = por %p93, %p94
      %p96 = scmp.ne.s32.totalorder %s87, %s88
      %p97 = scmp.eq.s32.totalorder %s21, 0
      %p98 = por %p96, %p97
      %p99 = scmp.ne.s32.totalorder %s87, %s88
      %p100 = scmp.eq.s32.totalorder %s22, 1
      %p101 = por %p99, %p100
      %p103 = scmp.ne.s32.totalorder %s88, %s102
      %p104 = scmp.eq.s32.totalorder %s22, 0
      %p105 = por %p103, %p104
      %s106 = ssub.s32 %s23, %s35
      %s107 = ssub.s32 %s24, %s31
      %s108 = sor.u32 %s106, %s107
      %p109 = scmp.eq.s32.totalorder %s108, 0
      %s111 = sadd.s32 %s110, 1
      %s112 = scalar_select %p109, %s110, %s111
      %p115 = pneg %p109
      %p116 = scmp.eq.s32.totalorder %s16, 1
      %p117 = por %p115, %p116
      %p118 = scmp.ne.s32.totalorder %s110, %s113
      %p119 = scmp.eq.s32.totalorder %s16, 0
      %p120 = por %p118, %p119
      %p121 = scmp.ne.s32.totalorder %s110, %s113
      %p122 = scmp.eq.s32.totalorder %s21, 1
      %p123 = por %p121, %p122
      %p124 = scmp.ne.s32.totalorder %s113, %s114
      %p125 = scmp.eq.s32.totalorder %s21, 0
      %p126 = por %p124, %p125
      %p127 = scmp.ne.s32.totalorder %s113, %s114
      %p128 = scmp.eq.s32.totalorder %s22, 1
      %p129 = por %p127, %p128
      %p131 = scmp.ne.s32.totalorder %s114, %s130
      %p132 = scmp.eq.s32.totalorder %s22, 0
      %p133 = por %p131, %p132
      %p134 = scmp.le.s32.totalorder 1, %s16
      %p135 = scmp.lt.s32.totalorder %s16, 3
      %p136 = pnand %p134, %p135
      %p137 = pneg %p136
      // Predicated region
      $region9: #{tpu_custom_call.1} parent=5 // pred_check
        _
      $region10: #{tpu_custom_call.1} parent=5 // pred_check_branch
        %139 = sbr.rel (%p136) target = $region12
      $region11: #{tpu_custom_call.1} parent=5 // pred_region
        %s140 = ssub.s32 %s16, 1
        // Predicated region
        $region13: #{tpu_custom_call.1} parent=11 // pred_check
          %p141 = pneg %p77
        $region14: #{tpu_custom_call.1} parent=11 // pred_check_branch
          %143 = sbr.rel (%p141) target = $region16
        $region15: #{tpu_custom_call.1} parent=11 // pred_region
          _
        $region16: #{tpu_custom_call.1} parent=11 // pred_fallthru
          _
        // Predicated region
        $region17: #{tpu_custom_call.1} parent=11 // pred_check
          %p144 = pneg %p98
        $region18: #{tpu_custom_call.1} parent=11 // pred_check_branch
          %146 = sbr.rel (%p144) target = $region20
        $region19: #{tpu_custom_call.1} parent=11 // pred_region
          _
        $region20: #{tpu_custom_call.1} parent=11 // pred_fallthru
          _
      $region12: #{tpu_custom_call.1} parent=5 // pred_fallthru
        _
      %p147 = scmp.lt.s32.totalorder %s16, 2
      // Predicated region
      $region21: #{tpu_custom_call.1} parent=5 // pred_check
        %p148 = pneg %p147
      $region22: #{tpu_custom_call.1} parent=5 // pred_check_branch
        %150 = sbr.rel (%p148) target = $region24
      $region23: #{tpu_custom_call.1} parent=5 // pred_region
        // Predicated region
        $region25: #{tpu_custom_call.1} parent=23 // pred_check
          %p151 = pneg %p50
        $region26: #{tpu_custom_call.1} parent=23 // pred_check_branch
          %153 = sbr.rel (%p151) target = $region28
        $region27: #{tpu_custom_call.1} parent=23 // pred_region
          %s154 = sand.u32 %s40, 1
          %s155 = scalar_lea.sflag [#allocation4], %s154
          %s156 = sand.u32 %s40, 1
          %s157 = smul.addr %s156, 128
          %s158 = scalar_lea.vmem [#allocation3], %s157
          %s159 = smul.u32 2, %s24
          %161 = vsyncadd %s155, 0
          %s162 = smul.addr %s23, 16
          %s163 = sadd.s32 %s159, %s162
          %s164 = smul.addr %s163, 8
          %s165 = scalar_lea.hbm %s0, %s164
          %s166 = sshll.u32 %s165, 4
          %s167 = int_to_ptr.hbm [resolvable:$true] %s166
          %s168 = sshll.u32 %s158, 4
          %s169 = int_to_ptr.vmem [resolvable:$true] %s168
          %174 = dma.hbm_to_vmem [thread:$0]  %s167, 2048, %s169, %s155, 256, 256, 16
        $region28: #{tpu_custom_call.1} parent=23 // pred_fallthru
          _
      $region24: #{tpu_custom_call.1} parent=5 // pred_fallthru
        _
      %p175 = scmp.le.s32.totalorder 1, %s16
      %p176 = scmp.lt.s32.totalorder %s16, 3
      %p177 = pnand %p175, %p176
      %p178 = pneg %p177
      // Predicated region
      $region29: #{tpu_custom_call.1} parent=5 // pred_check
        _
      $region30: #{tpu_custom_call.1} parent=5 // pred_check_branch
        %180 = sbr.rel (%p177) target = $region32
      $region31: #{tpu_custom_call.1} parent=5 // pred_region
        %s181 = ssub.s32 %s16, 1
        %s182 = sand.u32 %s43, 1
        %s183 = scalar_lea.sflag [#allocation4], %s182
        %s184 = sand.u32 %s43, 1
        %s185 = smul.addr %s184, 128
        %s186 = scalar_lea.vmem [#allocation3], %s185
        // Predicated region
        $region33: #{tpu_custom_call.1} parent=31 // pred_check
          %p187 = pneg %p56
        $region34: #{tpu_custom_call.1} parent=31 // pred_check_branch
          %189 = sbr.rel (%p187) target = $region36
        $region35: #{tpu_custom_call.1} parent=31 // pred_region
          %191 = dma.done %s183, 2048
        $region36: #{tpu_custom_call.1} parent=31 // pred_fallthru
          _
        %s192 = sand.u32 %s43, 1
        %s193 = scalar_lea.sflag [#allocation4], %s192
        %s194 = sand.u32 %s43, 1
        %s195 = smul.addr %s194, 128
        %s196 = scalar_lea.vmem [#allocation3], %s195
        %p197 = pneg %p56
        %p198 = pneg %p53
        %p199 = pneg %p77
        %p200 = pneg %p74
        %p201 = pneg %p98
        %p202 = pneg %p95
        %p203 = pneg %p126
        %p204 = pneg %p123
        %s205 = sand.u32 %s113, 1
        %s206 = scalar_lea.sflag [#allocation5], %s205
        %s207 = sand.u32 %s113, 1
        %s208 = smul.addr %s207, 2
        %s209 = scalar_lea.vmem [#allocation6], %s208
        %s210 = smul.u32 2, %s26
        %s211 = smul.u32 2, %s26
        %v212 = vld [vmem:[%s186] sm:$0xff]
        %v213 = vld [vmem:[%s186 + $0x8] sm:$0xff]
        %v214 = vld [vmem:[%s186 + $0x10] sm:$0xff]
        %v215 = vld [vmem:[%s186 + $0x18] sm:$0xff]
        %v216 = vld [vmem:[%s186 + $0x20] sm:$0xff]
        %v217 = vld [vmem:[%s186 + $0x28] sm:$0xff]
        %v218 = vld [vmem:[%s186 + $0x30] sm:$0xff]
        %v219 = vld [vmem:[%s186 + $0x38] sm:$0xff]
        %v220 = vld [vmem:[%s186 + $0x40] sm:$0xff]
        %v221 = vld [vmem:[%s186 + $0x48] sm:$0xff]
        %v222 = vld [vmem:[%s186 + $0x50] sm:$0xff]
        %v223 = vld [vmem:[%s186 + $0x58] sm:$0xff]
        %v224 = vld [vmem:[%s186 + $0x60] sm:$0xff]
        %v225 = vld [vmem:[%s186 + $0x68] sm:$0xff]
        %v226 = vld [vmem:[%s186 + $0x70] sm:$0xff]
        %v227 = vld [vmem:[%s186 + $0x78] sm:$0xff]
        %v228 = vld [vmem:[%s1] sm:$0xff]
        %v229 = vld [vmem:[%s1 + $0x8] sm:$0xff]
        %v230 = vld [vmem:[%s1 + $0x10] sm:$0xff]
        %v231 = vld [vmem:[%s1 + $0x18] sm:$0xff]
        %v232 = vld [vmem:[%s1 + $0x20] sm:$0xff]
        %v233 = vld [vmem:[%s1 + $0x28] sm:$0xff]
        %v234 = vld [vmem:[%s1 + $0x30] sm:$0xff]
        %v235 = vld [vmem:[%s1 + $0x38] sm:$0xff]
        %237 = vset.pattern.permute.xlu0 0
        %238 = vperm.xlu0 %237, %v228
        %v239 = vpop.permute.xlu0 %238
        %242 = vset.pattern.permute.xlu0 0
        %243 = vperm.xlu0 %242, %v229
        %v244 = vpop.permute.xlu0 %243
        %247 = vset.pattern.permute.xlu0 0
        %248 = vperm.xlu0 %247, %v230
        %v249 = vpop.permute.xlu0 %248
        %252 = vset.pattern.permute.xlu0 0
        %253 = vperm.xlu0 %252, %v231
        %v254 = vpop.permute.xlu0 %253
        %257 = vset.pattern.permute.xlu0 0
        %258 = vperm.xlu0 %257, %v232
        %v259 = vpop.permute.xlu0 %258
        %262 = vset.pattern.permute.xlu0 0
        %263 = vperm.xlu0 %262, %v233
        %v264 = vpop.permute.xlu0 %263
        %267 = vset.pattern.permute.xlu0 0
        %268 = vperm.xlu0 %267, %v234
        %v269 = vpop.permute.xlu0 %268
        %272 = vset.pattern.permute.xlu0 0
        %273 = vperm.xlu0 %272, %v235
        %v274 = vpop.permute.xlu0 %273
        %v276 = vmul.f32 %v212, %v239
        %v277 = vmul.f32 %v213, %v239
        %v278 = vmul.f32 %v214, %v244
        %v279 = vmul.f32 %v215, %v244
        %v280 = vmul.f32 %v216, %v249
        %v281 = vmul.f32 %v217, %v249
        %v282 = vmul.f32 %v218, %v254
        %v283 = vmul.f32 %v219, %v254
        %v284 = vmul.f32 %v220, %v259
        %v285 = vmul.f32 %v221, %v259
        %v286 = vmul.f32 %v222, %v264
        %v287 = vmul.f32 %v223, %v264
        %v288 = vmul.f32 %v224, %v269
        %v289 = vmul.f32 %v225, %v269
        %v290 = vmul.f32 %v226, %v274
        %v291 = vmul.f32 %v227, %v274
        %v292 = vadd.f32 %v276, %v278
        %v293 = vadd.f32 %v292, %v280
        %v294 = vadd.f32 %v293, %v282
        %v295 = vadd.f32 %v294, %v284
        %v296 = vadd.f32 %v295, %v286
        %v297 = vadd.f32 %v296, %v288
        %v298 = vadd.f32 %v297, %v290
        %v299 = vrot.slane %v298, 4
        %v300 = vadd.f32 %v298, %v299
        %v301 = vrot.slane %v300, 2
        %v302 = vadd.f32 %v300, %v301
        %v303 = vrot.slane %v302, 1
        %v304 = vadd.f32 %v302, %v303
        %v305 = vadd.f32 %v277, %v279
        %v306 = vadd.f32 %v305, %v281
        %v307 = vadd.f32 %v306, %v283
        %v308 = vadd.f32 %v307, %v285
        %v309 = vadd.f32 %v308, %v287
        %v310 = vadd.f32 %v309, %v289
        %v311 = vadd.f32 %v310, %v291
        %v312 = vrot.slane %v311, 4
        %v313 = vadd.f32 %v311, %v312
        %v314 = vrot.slane %v313, 2
        %v315 = vadd.f32 %v313, %v314
        %v316 = vrot.slane %v315, 1
        %v317 = vadd.f32 %v315, %v316
        %s318 = sld [smem:[#allocation2]]
        %v319 = vstv %s318
        %v320 = vadd.f32 %v304, %v319
        %v321 = vadd.f32 %v317, %v319
        %v324 = vrot.slane %v321, 7
        %vm325 = vcmask 1040384
        %v326 = vsel %vm325, %v320, %v324
        %v328 = vlaneseq
        %vm329 = vcmp.ge.s32.totalorder %v328, 0
        %vm330 = vcmp.lt.s32.totalorder %v328, 256
        %vm331 = vmand %vm329, %vm330
        %332 = vst.msk [vmem:[%s209] sm:$0x3] %vm331, %v326
        %s333 = sand.u32 %s113, 1
        %s334 = scalar_lea.sflag [#allocation5], %s333
        %s335 = sand.u32 %s113, 1
        %s336 = smul.addr %s335, 2
        %s337 = scalar_lea.vmem [#allocation6], %s336
        // Predicated region
        $region37: #{tpu_custom_call.1} parent=31 // pred_check
          %p338 = pneg %p123
        $region38: #{tpu_custom_call.1} parent=31 // pred_check_branch
          %340 = sbr.rel (%p338) target = $region40
        $region39: #{tpu_custom_call.1} parent=31 // pred_region
          %s341 = smul.u32 2, %s26
          %343 = vsyncadd %s334, 0
          %s344 = smul.addr %s25, 2
          %s345 = sadd.s32 %s341, %s344
          %s346 = scalar_lea.hbm %s3, %s345
          %s348 = sshll.u32 %s337, 4
          %s349 = int_to_ptr.vmem [resolvable:$true] %s348
          %s350 = sshll.u32 %s346, 4
          %s351 = int_to_ptr.hbm [resolvable:$true] %s350
          %353 = dma.vmem_to_hbm [thread:$0]  %s349, 32, %s351, %s334
        $region40: #{tpu_custom_call.1} parent=31 // pred_fallthru
          _
      $region32: #{tpu_custom_call.1} parent=5 // pred_fallthru
        _
      %p354 = scmp.le.s32.totalorder 2, %s16
      // Predicated region
      $region41: #{tpu_custom_call.1} parent=5 // pred_check
        %p355 = pneg %p354
      $region42: #{tpu_custom_call.1} parent=5 // pred_check_branch
        %357 = sbr.rel (%p355) target = $region44
      $region43: #{tpu_custom_call.1} parent=5 // pred_region
        %s358 = ssub.s32 %s16, 2
        // Predicated region
        $region45: #{tpu_custom_call.1} parent=43 // pred_check
          %p359 = pneg %p129
        $region46: #{tpu_custom_call.1} parent=43 // pred_check_branch
          %361 = sbr.rel (%p359) target = $region48
        $region47: #{tpu_custom_call.1} parent=43 // pred_region
          %s362 = sand.u32 %s114, 1
          %s363 = scalar_lea.sflag [#allocation5], %s362
          %s364 = sand.u32 %s114, 1
          %s365 = smul.addr %s364, 2
          %s366 = scalar_lea.vmem [#allocation6], %s365
          %368 = dma.done %s363, 32
        $region48: #{tpu_custom_call.1} parent=43 // pred_fallthru
          _
      $region44: #{tpu_custom_call.1} parent=5 // pred_fallthru
        _
    $region6: #{tpu_custom_call.1} parent=1 // loop_footer
      %s20 = sadd.s32 1, %s16
    $region7: #{tpu_custom_call.1} parent=1 // loop_footer_branch
      %15 = sbr.rel target = $region3
    $region8: #{tpu_custom_call.1} parent=1 // loop_exit
      _
    %369 = vsyncpa [#allocation4], 1
    %s370 = scalar_lea.sflag [#allocation4], 1
    %371 = vsyncpa %s370, 1
    %372 = vsyncpa [#allocation5], 1
    %s373 = scalar_lea.sflag [#allocation5], 1
    %374 = vsyncpa %s373, 1

</llo_original>
